<compile_context>
chip_gen: v5e
topology: v5e:2x2
jax: 0.10.0
libtpu: 0.0.40
codegen_flags: <defaults>
</compile_context>

<pallas_src>
import functools

import jax
import jax.numpy as jnp
from jax.experimental import pallas as pl
from jax.experimental.pallas import tpu as pltpu

_MAX_ROW_TILE = 256
_INPUT_VMEM_BUDGET = 24 * 1024 * 1024  # bytes: 2 inputs x 2 pipeline buffers


def _pick_row_tile(n_rows, n_lanes, itemsize):
    """Largest sublane-aligned row tile whose double-buffered inputs fit VMEM."""
    max_rows = _INPUT_VMEM_BUDGET // (4 * n_lanes * itemsize)  # 2 inputs x 2 bufs
    max_rows = max(8, (max_rows // 8) * 8)
    tile = min(_MAX_ROW_TILE, max_rows)
    if n_rows <= tile:
        return n_rows  # single full-extent block (always layout-legal)
    return tile


def _wsq_err_kernel(pred_ref, tgt_ref, w_ref, out_ref, *, n_rows, tile):
    """out[row] = w[row]^2 * sum_lanes (pred[row] - tgt[row])^2 for this row tile."""
    i = pl.program_id(0)

    diff = pred_ref[...].astype(jnp.float32) - tgt_ref[...].astype(jnp.float32)
    row_sq = jnp.sum(diff * diff, axis=-1, keepdims=True)  # (tile, 1)

    if n_rows % tile != 0:
        # Last block is partial: rows past n_rows hold garbage -> zero them out.
        row_ids = i * tile + jax.lax.broadcasted_iota(jnp.int32, (tile, 1), 0)
        row_sq = jnp.where(row_ids < n_rows, row_sq, 0.0)

    w = w_ref[pl.ds(i * tile, tile), :].astype(jnp.float32)  # (tile, 1), resident
    out_ref[...] = w * w * row_sq


@functools.partial(jax.jit, static_argnames=("loss_weight",))
def topdown_heatmap_loss(output, target, target_weight, loss_weight=(1.0,)):
    """output, target: [B, K, H, W]; target_weight: [B, K, 1]."""
    B, K, H, W = output.shape
    N, L = B * K, H * W
    itemsize = jnp.dtype(output.dtype).itemsize

    pred = output.reshape(N, L)
    tgt = target.reshape(N, L)
    w = target_weight.reshape(N, 1).astype(jnp.float32)

    tile = _pick_row_tile(N, L, itemsize)
    num_blocks = -(-N // tile)
    n_pad_rows = num_blocks * tile
    if n_pad_rows != N:
        # Only the tiny weight vector is padded (zero weight -> zero contribution).
        w = jnp.pad(w, ((0, n_pad_rows - N), (0, 0)))

    kernel = functools.partial(_wsq_err_kernel, n_rows=N, tile=tile)

    partials = pl.pallas_call(
        kernel,
        out_shape=jax.ShapeDtypeStruct((n_pad_rows, 1), jnp.float32),
        grid_spec=pltpu.PrefetchScalarGridSpec(
            num_scalar_prefetch=0,
            grid=(num_blocks,),
            in_specs=[
                pl.BlockSpec((tile, L), lambda i: (i, 0)),
                pl.BlockSpec((tile, L), lambda i: (i, 0)),
                # Whole weight vector resident in VMEM (same block every step).
                pl.BlockSpec((n_pad_rows, 1), lambda i: (0, 0)),
            ],
            out_specs=pl.BlockSpec((tile, 1), lambda i: (i, 0)),
        ),
        compiler_params=pltpu.CompilerParams(
            dimension_semantics=("parallel",),  # independent blocks -> v7x dual-TC
            vmem_limit_bytes=40 * 1024 * 1024,
        ),
        cost_estimate=pl.CostEstimate(
            flops=3 * N * L,
            transcendentals=0,
            bytes_accessed=2 * N * L * itemsize + 2 * n_pad_rows * 4,
        ),
    )(pred, tgt, w)

    sq_sum = jnp.sum(partials)
    heatmap_loss = 0.5 * sq_sum / jnp.float32(N * L)
    weighted = jnp.float32(loss_weight[0]) * heatmap_loss

    # TODO(synk): SimDRLoss branch omitted (cfg.PIPELINE.simdr_split_ratio == 0);
    #             auto_weight learnable params omitted (cfg.LOSS.auto_weight == False).
    total = weighted
    return total, {"heatmap": weighted}


def _reference(output, target, target_weight, loss_weight=(1.0,)):
    B, K, H, W = output.shape
    diff = (output - target).reshape(B, K, H * W).astype(jnp.float32)
    wsq = (target_weight.reshape(B, K, 1).astype(jnp.float32)) ** 2
    return loss_weight[0] * 0.5 * jnp.mean(wsq * diff * diff)


if __name__ == "__main__":
    key = jax.random.PRNGKey(0)

    def run_case(B, K, H, W):
        k1, k2, k3 = jax.random.split(jax.random.fold_in(key, B * 1000 + K), 3)
        output = jax.random.normal(k1, (B, K, H, W), dtype=jnp.float32)
        target = jax.random.uniform(k2, (B, K, H, W), dtype=jnp.float32)
        target_weight = (jax.random.uniform(k3, (B, K, 1)) > 0.2).astype(jnp.float32)

        loss, loss_dict = topdown_heatmap_loss(
            output, target, target_weight, loss_weight=(1.0,)
        )
        loss = jax.block_until_ready(loss)
        ref = _reference(output, target, target_weight, loss_weight=(1.0,))
        assert jnp.allclose(loss, ref, rtol=1e-5, atol=1e-6), (B, K, H, W, loss, ref)

    # Small shape from the module spec (single-block path: N=8, L=256).
    run_case(2, 4, 16, 16)
    # Multi-block path with a partial tail block (N=264 > 256-row tile).
    run_case(8, 33, 16, 16)

    print("KERNEL_OK")
</pallas_src>

<mosaic_0001>
module attributes {stable_mosaic.version = 11 : i64} {
  func.func @_wsq_err_kernel(%arg0: i32, %arg1: memref<8x256xf32, #tpu.memory_space<vmem>>, %arg2: memref<8x256xf32, #tpu.memory_space<vmem>>, %arg3: memref<8x1xf32, #tpu.memory_space<vmem>>, %arg4: memref<8x1xf32, #tpu.memory_space<vmem>>) attributes {dimension_semantics = [#tpu.dimension_semantics<parallel>], iteration_bounds = array<i64: 1>, scalar_prefetch = 0 : i64, scratch_operands = 0 : i64, tpu.core_type = #tpu.core_type<tc>, window_params = [{transform_indices = @transform_0, window_bounds = array<i64: 8, 256>}, {transform_indices = @transform_1, window_bounds = array<i64: 8, 256>}, {pipeline_mode = #tpu.pipeline_mode<synchronous>, transform_indices = @transform_2, window_bounds = array<i64: 8, 1>}, {transform_indices = @transform_3, window_bounds = array<i64: 8, 1>}]} {
    %c0 = arith.constant 0 : index
    %c0_0 = arith.constant 0 : index
    %0 = vector.load %arg1[%c0, %c0_0] : memref<8x256xf32, #tpu.memory_space<vmem>>, vector<8x256xf32>
    %c0_1 = arith.constant 0 : index
    %c0_2 = arith.constant 0 : index
    %1 = vector.load %arg2[%c0_1, %c0_2] : memref<8x256xf32, #tpu.memory_space<vmem>>, vector<8x256xf32>
    %2 = arith.subf %0, %1 : vector<8x256xf32>
    %3 = arith.mulf %2, %2 : vector<8x256xf32>
    %cst = arith.constant dense<0.000000e+00> : vector<8xf32>
    %4 = vector.multi_reduction <add>, %3, %cst [1] : vector<8x256xf32> to vector<8xf32>
    %5 = vector.shape_cast %4 : vector<8xf32> to vector<8x1xf32>
    %c8_i32 = arith.constant 8 : i32
    %6 = arith.muli %arg0, %c8_i32 : i32
    %7 = arith.index_cast %6 : i32 to index
    %c0_3 = arith.constant 0 : index
    %8 = vector.load %arg3[%7, %c0_3] : memref<8x1xf32, #tpu.memory_space<vmem>>, vector<8x1xf32>
    %9 = arith.mulf %8, %8 : vector<8x1xf32>
    %10 = arith.mulf %9, %5 : vector<8x1xf32>
    %c0_4 = arith.constant 0 : index
    %c0_5 = arith.constant 0 : index
    %11 = vector.load %arg4[%c0_4, %c0_5] : memref<8x1xf32, #tpu.memory_space<vmem>>, vector<8x1xf32>
    tpu.vector_store %arg4[%c0_4, %c0_5], %10 {strides = array<i32>} : memref<8x1xf32, #tpu.memory_space<vmem>>, vector<8x1xf32>,
    return
  }
  func.func @transform_0(%arg0: i32) -> (i32, i32) {
    %c0_i32 = arith.constant 0 : i32
    %c0_i32_0 = arith.constant 0 : i32
    return %arg0, %c0_i32 : i32, i32
  }
  func.func @transform_1(%arg0: i32) -> (i32, i32) {
    %c0_i32 = arith.constant 0 : i32
    %c0_i32_0 = arith.constant 0 : i32
    return %arg0, %c0_i32 : i32, i32
  }
  func.func @transform_2(%arg0: i32) -> (i32, i32) {
    %c0_i32 = arith.constant 0 : i32
    %c0_i32_0 = arith.constant 0 : i32
    %c0_i32_1 = arith.constant 0 : i32
    return %c0_i32, %c0_i32_0 : i32, i32
  }
  func.func @transform_3(%arg0: i32) -> (i32, i32) {
    %c0_i32 = arith.constant 0 : i32
    %c0_i32_0 = arith.constant 0 : i32
    return %arg0, %c0_i32 : i32, i32
  }
}

</mosaic_0001>

<llo_original>
// kernel: topdown_heatmap_loss.1
$region0: #{topdown_heatmap_loss.1}
  #allocation0 [shape = 'u32[]', space=smem, size = 0x4, offset = 0x4, fixed_abs, tag = 'smem constant byte address 0x4 - core index']
  #allocation1 [shape = 'u32[72,128]{1,0:T(1,128)}', space=vmem, size = 0x9000, scoped, tag = 'internal scratch']
  %s0 = inlined_call_operand.vmem [shape: f32[8,256], index: 0, kind: input, shape index: {}]
  %s1 = inlined_call_operand.vmem [shape: f32[8,256], index: 1, kind: input, shape index: {}]
  %s2 = inlined_call_operand.vmem [shape: f32[8,1], index: 2, kind: input, shape index: {}]
  %s3 = inlined_call_operand.vmem [shape: f32[8,1], index: 3, kind: output, shape index: {}]
  %s4 = sld [smem:[#allocation0]]
  $region22: #{topdown_heatmap_loss.1} parent=0
    _
  %s6 = ssub.s32 1, %s4
  %s7 = scalar_select 0, %s6, %s4
  // Predicated region
  $region2: #{topdown_heatmap_loss.1} parent=0 // pred_check
    _
  $region3: #{topdown_heatmap_loss.1} parent=0 // pred_check_branch
    %9 = sbr.rel (0) target = $region5
  $region4: #{topdown_heatmap_loss.1} parent=0 // pred_region
    _
  $region5: #{topdown_heatmap_loss.1} parent=0 // pred_fallthru
    _
  // Predicated region
  $region6: #{topdown_heatmap_loss.1} parent=0 // pred_check
    _
  $region7: #{topdown_heatmap_loss.1} parent=0 // pred_check_branch
    %11 = sbr.rel (0) target = $region9
  $region8: #{topdown_heatmap_loss.1} parent=0 // pred_region
    _
  $region9: #{topdown_heatmap_loss.1} parent=0 // pred_fallthru
    _
  // Predicated region
  $region10: #{topdown_heatmap_loss.1} parent=0 // pred_check
    _
  $region11: #{topdown_heatmap_loss.1} parent=0 // pred_check_branch
    %13 = sbr.rel (0) target = $region13
  $region12: #{topdown_heatmap_loss.1} parent=0 // pred_region
    _
  $region13: #{topdown_heatmap_loss.1} parent=0 // pred_fallthru
    _
  %v14 = vld [vmem:[%s0] sm:$0xff]
  %v15 = vld [vmem:[%s0 + $0x8] sm:$0xff]
  %v16 = vld [vmem:[%s1] sm:$0xff]
  %v17 = vld [vmem:[%s1 + $0x8] sm:$0xff]
  %v18 = vsub.f32 %v14, %v16
  %v19 = vsub.f32 %v15, %v17
  %v20 = vmul.f32 %v18, %v18
  %v21 = vmul.f32 %v19, %v19
  %v22 = vadd.f32 %v20, %v21
  %23 = vadd.xlane.f32.xlu0 %v22
  %v24 = vpop.xlane.xlu0 %23
  %s25 = smul.u32 0, 8
  %s26 = scalar_lea.vmem %s2, %s25
  %v27 = vld [vmem:[%s26] sm:$0xff]
  %v28 = vmul.f32 %v27, %v27
  %v29 = vmul.f32 %v28, %v24
  %vm30 = vcmask 7168
  %31 = vst.msk [vmem:[%s3] sm:$0xff] %vm30, %v29
  // Predicated region
  $region14: #{topdown_heatmap_loss.1} parent=0 // pred_check
    _
  $region15: #{topdown_heatmap_loss.1} parent=0 // pred_check_branch
    %33 = sbr.rel (0) target = $region17
  $region16: #{topdown_heatmap_loss.1} parent=0 // pred_region
    _
  $region17: #{topdown_heatmap_loss.1} parent=0 // pred_fallthru
    _
  // Predicated region
  $region18: #{topdown_heatmap_loss.1} parent=0 // pred_check
    _
  $region19: #{topdown_heatmap_loss.1} parent=0 // pred_check_branch
    %35 = sbr.rel (0) target = $region21
  $region20: #{topdown_heatmap_loss.1} parent=0 // pred_region
    _
  $region21: #{topdown_heatmap_loss.1} parent=0 // pred_fallthru
    _

</llo_original>
